<compile_context>
chip_gen: v6e
topology: v6e:2x2x1
jax: 0.10.0
libtpu: 0.0.40
codegen_flags: <defaults>
</compile_context>

<pallas_src>
import functools
import math

import jax
import jax.numpy as jnp
import numpy as np
from jax.experimental import pallas as pl
from jax.experimental.pallas import tpu as pltpu


def _conv_span_kernel(x_ref, w_ref, b_ref, out_ref, *, K, pad, S,
                      question_length, total_rows, use_roll):
    # x_ref   : (R, H)   hidden rows for Bb whole batch elements (R = Bb * S)
    # w_ref   : (H, 2K)  fused conv weights, column j = 2*k + head (0=start, 1=end)
    # b_ref   : (1, 2)   (start_bias, end_bias), f32
    # out_ref : (R, 2)   per-row (start_logit, end_logit), f32
    R = out_ref.shape[0]
    x = x_ref[...]
    w = w_ref[...]

    # One fused MXU matmul: all K taps and both heads at once, f32 accumulation.
    y = jnp.dot(x, w, preferred_element_type=jnp.float32)          # (R, 2K)

    # In-kernel mask (no HBM-streamed mask input): question rows act as the zero
    # padding of the sliced conv (PyTorch slices the sequence *before* the conv),
    # and rows past B*S (partial last block) are garbage that must be zeroed.
    row = jax.lax.broadcasted_iota(jnp.int32, (R, 1), 0)            # local row
    grow = pl.program_id(0) * R + row                               # global row
    keep = jnp.logical_and(row % S >= question_length, grow < total_rows)
    y = jnp.where(keep, y, 0.0)

    acc = jnp.zeros((R, 2), jnp.float32)
    for k in range(K):                         # K tiny & static -> unrolled
        zk = y[:, 2 * k:2 * k + 2]             # (R, 2) contribution of tap k
        shift = (pad - k) % R                  # output row s reads y row s + k - pad
        if shift:
            if use_roll:
                # Circular wrap is safe (question_length >= pad): wrapped rows
                # read already-zeroed question rows or land in question-row /
                # out-of-bounds outputs that are discarded.
                zk = pltpu.roll(zk, shift=shift, axis=0)
            else:
                # Fallback (only used if R is not sublane-aligned).
                sh = pad - k
                if sh > 0:
                    zk = jnp.concatenate(
                        [jnp.zeros((sh, 2), jnp.float32), zk[:R - sh, :]], axis=0)
                else:
                    zk = jnp.concatenate(
                        [zk[-sh:, :], jnp.zeros((-sh, 2), jnp.float32)], axis=0)
        acc = acc + zk

    out_ref[...] = (acc + b_ref[...]).astype(out_ref.dtype)


def _tpu_budgets():
    """Hardware-aware per-block byte budget and scoped-VMEM limit."""
    vmem_bytes = 64 << 20                      # conservative default (v7x per-TC)
    try:
        info = pltpu.get_tpu_info()
        vmem_bytes = int(getattr(info, "vmem_capacity_bytes", vmem_bytes))
    except Exception:
        pass
    # Double-buffered input blocks (2x target) stay well inside vmem_limit:
    #   v5e/v6e (128 MiB): target 16 MiB, limit 64 MiB
    #   v7x     ( 64 MiB): target ~10.7 MiB, limit 32 MiB
    target_bytes = int(max(2 << 20, min(16 << 20, vmem_bytes // 6)))
    vmem_limit = int(max(32 << 20, min(64 << 20, vmem_bytes // 2)))
    return target_bytes, vmem_limit


def _choose_batch_block(B, S, H, itemsize, target_bytes):
    """Largest Bb (whole batch elements per block) whose (Bb*S, H) block fits the
    VMEM budget, keeps the sublane-aligned block shape for this dtype, and leaves
    >= 4 grid steps when possible (so both v7x TensorCores get pipelined work)."""
    sub = max(8, 32 // itemsize)               # sublane tile: 8 f32 / 16 bf16 / 32 i8
    step = sub // math.gcd(sub, S)             # smallest Bb with (Bb*S) % sub == 0
    row_bytes = S * H * itemsize
    n_granules = target_bytes // max(1, row_bytes * step)
    max_bb = max(step, n_granules * step)      # at least one aligned granule
    max_bb = min(max_bb, -(-B // step) * step)  # no point exceeding ceil(B/step)*step

    def best(min_steps):
        cands = [bb for bb in range(step, max_bb + 1, step)
                 if pl.cdiv(B, bb) >= min_steps]
        return max(cands) if cands else None

    for min_steps in (4, 2, 1):
        bb = best(min_steps)
        if bb is not None:
            return bb
    return step


def conv_span_heads(hidden, w_start, b_start, w_end, b_end, *, question_length,
                    kernel_size=3):
    """Pallas implementation of the 'conv' span heads.

    hidden : [B, S, H]  transformer hidden states (f32 or bf16).
    w_*    : [1, H, K]  Conv1d weights (PyTorch layout: out_ch, in_ch, k).
    b_*    : [1]        Conv1d bias.
    Returns (out_start, out_end), each [B, S - question_length], f32.
    """
    B, S, H = hidden.shape
    K = kernel_size
    pad = (K - 1) // 2
    # PyTorch's padding=(K-1)//2 only gives 'same' output length for odd K.
    assert K % 2 == 1, "kernel_size must be odd to match the PyTorch module"
    # question_length >= pad is also what makes the circular roll exact.
    assert pad <= question_length < S

    # --- glue (all tiny / metadata-only; no extra pass over the big tensor) ---
    x2 = hidden.reshape(B * S, H)                                   # free reshape
    # fused weights: column j = 2*k + head (head 0 = start, 1 = end)
    w = jnp.stack([w_start[0], w_end[0]], axis=-1).reshape(H, 2 * K)
    w = w.astype(hidden.dtype)
    bias = jnp.concatenate([b_start, b_end]).reshape(1, 2).astype(jnp.float32)

    itemsize = jnp.dtype(hidden.dtype).itemsize
    target_bytes, vmem_limit = _tpu_budgets()
    Bb = _choose_batch_block(B, S, H, itemsize, target_bytes)
    R = Bb * S
    grid = (pl.cdiv(B, Bb),)                   # partial last block masked in-kernel

    kernel = functools.partial(
        _conv_span_kernel, K=K, pad=pad, S=S, question_length=question_length,
        total_rows=B * S, use_roll=(R % 8 == 0))

    out = pl.pallas_call(
        kernel,
        out_shape=jax.ShapeDtypeStruct((B * S, 2), jnp.float32),
        grid_spec=pltpu.PrefetchScalarGridSpec(
            num_scalar_prefetch=0,
            grid=grid,
            in_specs=[
                pl.BlockSpec((R, H), lambda i: (i, 0)),          # hidden rows
                pl.BlockSpec((H, 2 * K), lambda i: (0, 0)),      # fused weights (resident)
                pl.BlockSpec((1, 2), lambda i: (0, 0)),          # biases (resident)
            ],
            out_specs=pl.BlockSpec((R, 2), lambda i: (i, 0)),
        ),
        compiler_params=pltpu.CompilerParams(
            dimension_semantics=("parallel",),
            vmem_limit_bytes=vmem_limit),
    )(x2, w, bias)

    out = out.reshape(B, S, 2)
    return out[:, question_length:, 0], out[:, question_length:, 1]


def _reference(hidden, w_start, b_start, w_end, b_end, *, question_length,
               kernel_size=3):
    """Plain-JAX reference with PyTorch Conv1d semantics (slice -> permute -> conv)."""
    pad = (kernel_size - 1) // 2
    x = jnp.transpose(hidden[:, question_length:, :], (0, 2, 1))    # [B, H, L]

    def conv1d(x_bhl, w_1hk, b_1):
        y = jax.lax.conv_general_dilated(
            x_bhl, w_1hk, window_strides=(1,), padding=[(pad, pad)],
            dimension_numbers=("NCH", "OIH", "NCH"))
        return y[:, 0, :] + b_1[0]

    return conv1d(x, w_start, b_start), conv1d(x, w_end, b_end)


if __name__ == "__main__":
    def run_case(key, B, S, H, question_length, kernel_size):
        k_h, k_ws, k_bs, k_we, k_be = jax.random.split(key, 5)
        hidden = jax.random.normal(k_h, (B, S, H), dtype=jnp.float32)

        # Deterministic "Conv1d(hidden_size, 1, kernel_size, padding)" params.
        fan_in = H * kernel_size
        bound = 1.0 / np.sqrt(fan_in)
        w_start = jax.random.uniform(k_ws, (1, H, kernel_size), jnp.float32, -bound, bound)
        b_start = jax.random.uniform(k_bs, (1,), jnp.float32, -bound, bound)
        w_end = jax.random.uniform(k_we, (1, H, kernel_size), jnp.float32, -bound, bound)
        b_end = jax.random.uniform(k_be, (1,), jnp.float32, -bound, bound)

        out_s, out_e = conv_span_heads(
            hidden, w_start, b_start, w_end, b_end,
            question_length=question_length, kernel_size=kernel_size)
        jax.block_until_ready((out_s, out_e))

        ref_s, ref_e = _reference(
            hidden, w_start, b_start, w_end, b_end,
            question_length=question_length, kernel_size=kernel_size)

        assert out_s.shape == (B, S - question_length)
        assert out_e.shape == (B, S - question_length)
        np.testing.assert_allclose(np.asarray(out_s), np.asarray(ref_s),
                                   rtol=1e-5, atol=1e-5)
        np.testing.assert_allclose(np.asarray(out_e), np.asarray(ref_e),
                                   rtol=1e-5, atol=1e-5)

    key = jax.random.PRNGKey(0)
    k1, k2 = jax.random.split(key)
    # Main case: multi-batch, >= 4 grid steps.
    run_case(k1, B=4, S=24, H=32, question_length=8, kernel_size=3)
    # Edge case: question_length == pad (exercises the roll-wrap correctness).
    run_case(k2, B=2, S=16, H=32, question_length=1, kernel_size=3)
    print("KERNEL_OK")
</pallas_src>

<mosaic_0001>
module attributes {stable_mosaic.version = 11 : i64} {
  func.func @_conv_span_kernel(%arg0: i32, %arg1: memref<24x32xf32, #tpu.memory_space<vmem>>, %arg2: memref<32x6xf32, #tpu.memory_space<vmem>>, %arg3: memref<1x2xf32, #tpu.memory_space<vmem>>, %arg4: memref<24x2xf32, #tpu.memory_space<vmem>>) attributes {dimension_semantics = [#tpu.dimension_semantics<parallel>], iteration_bounds = array<i64: 4>, scalar_prefetch = 0 : i64, scratch_operands = 0 : i64, tpu.core_type = #tpu.core_type<tc>, window_params = [{transform_indices = @transform_0, window_bounds = array<i64: 24, 32>}, {pipeline_mode = #tpu.pipeline_mode<synchronous>, transform_indices = @transform_1, window_bounds = array<i64: 32, 6>}, {pipeline_mode = #tpu.pipeline_mode<synchronous>, transform_indices = @transform_2, window_bounds = array<i64: 1, 2>}, {transform_indices = @transform_3, window_bounds = array<i64: 24, 2>}]} {
    %c0 = arith.constant 0 : index
    %c0_0 = arith.constant 0 : index
    %0 = vector.load %arg1[%c0, %c0_0] : memref<24x32xf32, #tpu.memory_space<vmem>>, vector<24x32xf32>
    %c0_1 = arith.constant 0 : index
    %c0_2 = arith.constant 0 : index
    %1 = vector.load %arg2[%c0_1, %c0_2] : memref<32x6xf32, #tpu.memory_space<vmem>>, vector<32x6xf32>
    %cst = arith.constant dense<0.000000e+00> : vector<24x6xf32>
    %2 = tpu.matmul %0, %1, %cst {dimension_numbers = #tpu.dot_dimension_numbers<[1], [0], [0], [1], [0, 0, 1, 1], [], []>} : vector<24x32xf32>, vector<32x6xf32>, vector<24x6xf32> -> vector<24x6xf32>
    %3 = tpu.iota {dimensions = array<i32: 0>} : vector<24x1xi32>
    %c24_i32 = arith.constant 24 : i32
    %4 = arith.muli %arg0, %c24_i32 : i32
    %5 = vector.broadcast %4 : i32 to vector<24x1xi32>
    %6 = arith.addi %5, %3 : vector<24x1xi32>
    %c24_i32_3 = arith.constant 24 : i32
    %c0_i32 = arith.constant 0 : i32
    %7 = arith.cmpi eq, %c24_i32_3, %c0_i32 : i32
    %c1_i32 = arith.constant 1 : i32
    %8 = arith.select %7, %c1_i32, %c24_i32_3 : i32
    %9 = vector.broadcast %8 : i32 to vector<24x1xi32>
    %10 = arith.remsi %3, %9 : vector<24x1xi32>
    %c0_i32_4 = arith.constant 0 : i32
    %11 = vector.broadcast %c0_i32_4 : i32 to vector<24x1xi32>
    %12 = arith.cmpi ne, %10, %11 : vector<24x1xi32>
    %c0_i32_5 = arith.constant 0 : i32
    %13 = vector.broadcast %c0_i32_5 : i32 to vector<24x1xi32>
    %14 = arith.cmpi slt, %10, %13 : vector<24x1xi32>
    %c0_i32_6 = arith.constant 0 : i32
    %15 = arith.cmpi slt, %8, %c0_i32_6 : i32
    %16 = vector.broadcast %15 : i1 to vector<24x1xi1>
    %17 = vector.broadcast %16 : vector<24x1xi1> to vector<24x1xi1>
    %18 = arith.xori %14, %17 : vector<24x1xi1>
    %19 = arith.andi %18, %12 : vector<24x1xi1>
    %20 = vector.broadcast %8 : i32 to vector<24x1xi32>
    %21 = arith.addi %10, %20 : vector<24x1xi32>
    %22 = arith.select %19, %21, %10 : vector<24x1xi1>, vector<24x1xi32>
    %c8_i32 = arith.constant 8 : i32
    %23 = vector.broadcast %c8_i32 : i32 to vector<24x1xi32>
    %24 = arith.cmpi sge, %22, %23 : vector<24x1xi32>
    %c96_i32 = arith.constant 96 : i32
    %25 = vector.broadcast %c96_i32 : i32 to vector<24x1xi32>
    %26 = arith.cmpi slt, %6, %25 : vector<24x1xi32>
    %27 = arith.andi %24, %26 : vector<24x1xi1>
    %cst_7 = arith.constant 0.000000e+00 : f32
    %28 = vector.shape_cast %27 : vector<24x1xi1> to vector<24x1xi1>
    %29 = vector.broadcast %28 : vector<24x1xi1> to vector<24x6xi1>
    %30 = vector.broadcast %cst_7 : f32 to vector<24x6xf32>
    %31 = arith.select %29, %2, %30 : vector<24x6xi1>, vector<24x6xf32>
    %cst_8 = arith.constant 0.000000e+00 : f32
    %32 = vector.broadcast %cst_8 : f32 to vector<24x2xf32>
    %33 = vector.extract_strided_slice %31 {offsets = [0, 0], sizes = [24, 2], strides = [1, 1]} : vector<24x6xf32> to vector<24x2xf32>
    %c1_i32_9 = arith.constant 1 : i32
    %34 = tpu.dynamic_rotate %33 by %c1_i32_9 dim 0 : vector<24x2xf32>, i32 -> vector<24x2xf32>
    %35 = arith.addf %32, %34 : vector<24x2xf32>
    %36 = vector.extract_strided_slice %31 {offsets = [0, 2], sizes = [24, 2], strides = [1, 1]} : vector<24x6xf32> to vector<24x2xf32>
    %37 = arith.addf %35, %36 : vector<24x2xf32>
    %38 = vector.extract_strided_slice %31 {offsets = [0, 4], sizes = [24, 2], strides = [1, 1]} : vector<24x6xf32> to vector<24x2xf32>
    %c23_i32 = arith.constant 23 : i32
    %39 = tpu.dynamic_rotate %38 by %c23_i32 dim 0 : vector<24x2xf32>, i32 -> vector<24x2xf32>
    %40 = arith.addf %37, %39 : vector<24x2xf32>
    %c0_10 = arith.constant 0 : index
    %c0_11 = arith.constant 0 : index
    %41 = vector.load %arg3[%c0_10, %c0_11] : memref<1x2xf32, #tpu.memory_space<vmem>>, vector<1x2xf32>
    %42 = vector.broadcast %41 : vector<1x2xf32> to vector<24x2xf32>
    %43 = arith.addf %40, %42 : vector<24x2xf32>
    %c0_12 = arith.constant 0 : index
    %c0_13 = arith.constant 0 : index
    %44 = vector.load %arg4[%c0_12, %c0_13] : memref<24x2xf32, #tpu.memory_space<vmem>>, vector<24x2xf32>
    tpu.vector_store %arg4[%c0_12, %c0_13], %43 {strides = array<i32>} : memref<24x2xf32, #tpu.memory_space<vmem>>, vector<24x2xf32>,
    return
  }
  func.func @transform_0(%arg0: i32) -> (i32, i32) {
    %c0_i32 = arith.constant 0 : i32
    %c0_i32_0 = arith.constant 0 : i32
    return %arg0, %c0_i32 : i32, i32
  }
  func.func @transform_1(%arg0: i32) -> (i32, i32) {
    %c0_i32 = arith.constant 0 : i32
    %c0_i32_0 = arith.constant 0 : i32
    %c0_i32_1 = arith.constant 0 : i32
    return %c0_i32, %c0_i32_0 : i32, i32
  }
  func.func @transform_2(%arg0: i32) -> (i32, i32) {
    %c0_i32 = arith.constant 0 : i32
    %c0_i32_0 = arith.constant 0 : i32
    %c0_i32_1 = arith.constant 0 : i32
    return %c0_i32, %c0_i32_0 : i32, i32
  }
  func.func @transform_3(%arg0: i32) -> (i32, i32) {
    %c0_i32 = arith.constant 0 : i32
    %c0_i32_0 = arith.constant 0 : i32
    return %arg0, %c0_i32 : i32, i32
  }
}

</mosaic_0001>

<llo_original>
// kernel: tpu_custom_call.1
$region0: #{tpu_custom_call.1}
  #allocation0 [shape = 'u32[]', space=smem, size = 0x4, offset = 0x4, fixed_abs, tag = 'smem constant byte address 0x4 - core index']
  #allocation1 [shape = 'u32[144,128]{1,0:T(1,128)}', space=vmem, size = 0x12000, scoped, tag = 'internal scratch']
  %s0 = inlined_call_operand.vmem [shape: f32[96,32], index: 0, kind: input, shape index: {}]
  %s1 = inlined_call_operand.vmem [shape: f32[32,6], index: 1, kind: input, shape index: {}]
  %s2 = inlined_call_operand.vmem [shape: f32[1,2], index: 2, kind: input, shape index: {}]
  %s3 = inlined_call_operand.vmem [shape: f32[96,2], index: 3, kind: output, shape index: {}]
  %s4 = sld [smem:[#allocation0]]
  $region45: #{tpu_custom_call.1} parent=0
    _
  %s6 = ssub.s32 1, %s4
  %s7 = scalar_select 0, %s6, %s4
  loop: start=0, step=1, limit=6
  $region2: #{tpu_custom_call.1} parent=0 // loop_pre_header
    _
  $region3: #{tpu_custom_call.1} parent=0 // loop_header
    %s9 = sphi 0, %s13
    %p10 = scmp.ge.s32.totalorder %s9, 6
    %s19 = sphi 0, %s21
    %s22 = sphi 0, %s19
    %s23 = sphi 0, %s22
    %s39 = sphi 0, %s23
    %s43 = sphi 0, %s43
    %s45 = sphi 0, %s43
    %s46 = sphi 0, %s45
    %s60 = sphi 0, %s46
    %s64 = sphi 0, %s64
    %s66 = sphi 0, %s64
    %s67 = sphi 0, %s66
    %s81 = sphi 0, %s67
    %s87 = sphi 0, %s89
    %s90 = sphi 0, %s87
    %s91 = sphi 0, %s90
    %s107 = sphi 0, %s91
  $region4: #{tpu_custom_call.1} parent=0 // loop_header_branch
    %12 = sbr.rel (%p10) target = $region8
  $region5: #{tpu_custom_call.1} parent=0 // loop_body
    %s14 = ssub.s32 %s9, 1
    %s15 = ssub.s32 %s9, 2
    %s16 = sadd.s32 %s9, 1
    %s17 = ssub.s32 %s9, %s16
    %p18 = scmp.eq.s32.totalorder %s17, 0
    %s20 = sadd.s32 %s19, 1
    %s21 = scalar_select %p18, %s19, %s20
    %p24 = pneg %p18
    %p25 = scmp.eq.s32.totalorder %s9, 3
    %p26 = por %p24, %p25
    %p27 = scmp.ne.s32.totalorder %s19, %s22
    %p28 = scmp.eq.s32.totalorder %s9, 0
    %p29 = por %p27, %p28
    %p30 = scmp.ne.s32.totalorder %s19, %s22
    %p31 = scmp.eq.s32.totalorder %s14, 3
    %p32 = por %p30, %p31
    %p33 = scmp.ne.s32.totalorder %s22, %s23
    %p34 = scmp.eq.s32.totalorder %s14, 0
    %p35 = por %p33, %p34
    %p36 = scmp.ne.s32.totalorder %s22, %s23
    %p37 = scmp.eq.s32.totalorder %s15, 3
    %p38 = por %p36, %p37
    %p40 = scmp.ne.s32.totalorder %s23, %s39
    %p41 = scmp.eq.s32.totalorder %s15, 0
    %p42 = por %p40, %p41
    %s44 = sadd.s32 %s43, 1
    %p47 = scmp.eq.s32.totalorder %s9, 3
    %p48 = scmp.ne.s32.totalorder %s43, %s45
    %p49 = scmp.eq.s32.totalorder %s9, 0
    %p50 = por %p48, %p49
    %p51 = scmp.ne.s32.totalorder %s43, %s45
    %p52 = scmp.eq.s32.totalorder %s14, 3
    %p53 = por %p51, %p52
    %p54 = scmp.ne.s32.totalorder %s45, %s46
    %p55 = scmp.eq.s32.totalorder %s14, 0
    %p56 = por %p54, %p55
    %p57 = scmp.ne.s32.totalorder %s45, %s46
    %p58 = scmp.eq.s32.totalorder %s15, 3
    %p59 = por %p57, %p58
    %p61 = scmp.ne.s32.totalorder %s46, %s60
    %p62 = scmp.eq.s32.totalorder %s15, 0
    %p63 = por %p61, %p62
    %s65 = sadd.s32 %s64, 1
    %p68 = scmp.eq.s32.totalorder %s9, 3
    %p69 = scmp.ne.s32.totalorder %s64, %s66
    %p70 = scmp.eq.s32.totalorder %s9, 0
    %p71 = por %p69, %p70
    %p72 = scmp.ne.s32.totalorder %s64, %s66
    %p73 = scmp.eq.s32.totalorder %s14, 3
    %p74 = por %p72, %p73
    %p75 = scmp.ne.s32.totalorder %s66, %s67
    %p76 = scmp.eq.s32.totalorder %s14, 0
    %p77 = por %p75, %p76
    %p78 = scmp.ne.s32.totalorder %s66, %s67
    %p79 = scmp.eq.s32.totalorder %s15, 3
    %p80 = por %p78, %p79
    %p82 = scmp.ne.s32.totalorder %s67, %s81
    %p83 = scmp.eq.s32.totalorder %s15, 0
    %p84 = por %p82, %p83
    %s85 = ssub.s32 %s9, %s16
    %p86 = scmp.eq.s32.totalorder %s85, 0
    %s88 = sadd.s32 %s87, 1
    %s89 = scalar_select %p86, %s87, %s88
    %p92 = pneg %p86
    %p93 = scmp.eq.s32.totalorder %s9, 3
    %p94 = por %p92, %p93
    %p95 = scmp.ne.s32.totalorder %s87, %s90
    %p96 = scmp.eq.s32.totalorder %s9, 0
    %p97 = por %p95, %p96
    %p98 = scmp.ne.s32.totalorder %s87, %s90
    %p99 = scmp.eq.s32.totalorder %s14, 3
    %p100 = por %p98, %p99
    %p101 = scmp.ne.s32.totalorder %s90, %s91
    %p102 = scmp.eq.s32.totalorder %s14, 0
    %p103 = por %p101, %p102
    %p104 = scmp.ne.s32.totalorder %s90, %s91
    %p105 = scmp.eq.s32.totalorder %s15, 3
    %p106 = por %p104, %p105
    %p108 = scmp.ne.s32.totalorder %s91, %s107
    %p109 = scmp.eq.s32.totalorder %s15, 0
    %p110 = por %p108, %p109
    %p111 = scmp.le.s32.totalorder 1, %s9
    %p112 = scmp.lt.s32.totalorder %s9, 5
    %p113 = pnand %p111, %p112
    %p114 = pneg %p113
    // Predicated region
    $region9: #{tpu_custom_call.1} parent=5 // pred_check
      _
    $region10: #{tpu_custom_call.1} parent=5 // pred_check_branch
      %116 = sbr.rel (%p113) target = $region12
    $region11: #{tpu_custom_call.1} parent=5 // pred_region
      %s117 = ssub.s32 %s9, 1
      // Predicated region
      $region13: #{tpu_custom_call.1} parent=11 // pred_check
        %p118 = pneg %p56
      $region14: #{tpu_custom_call.1} parent=11 // pred_check_branch
        %120 = sbr.rel (%p118) target = $region16
      $region15: #{tpu_custom_call.1} parent=11 // pred_region
        _
      $region16: #{tpu_custom_call.1} parent=11 // pred_fallthru
        _
      // Predicated region
      $region17: #{tpu_custom_call.1} parent=11 // pred_check
        %p121 = pneg %p77
      $region18: #{tpu_custom_call.1} parent=11 // pred_check_branch
        %123 = sbr.rel (%p121) target = $region20
      $region19: #{tpu_custom_call.1} parent=11 // pred_region
        _
      $region20: #{tpu_custom_call.1} parent=11 // pred_fallthru
        _
    $region12: #{tpu_custom_call.1} parent=5 // pred_fallthru
      _
    %p124 = scmp.lt.s32.totalorder %s9, 4
    // Predicated region
    $region21: #{tpu_custom_call.1} parent=5 // pred_check
      %p125 = pneg %p124
    $region22: #{tpu_custom_call.1} parent=5 // pred_check_branch
      %127 = sbr.rel (%p125) target = $region24
    $region23: #{tpu_custom_call.1} parent=5 // pred_region
      // Predicated region
      $region25: #{tpu_custom_call.1} parent=23 // pred_check
        %p128 = pneg %p29
      $region26: #{tpu_custom_call.1} parent=23 // pred_check_branch
        %130 = sbr.rel (%p128) target = $region28
      $region27: #{tpu_custom_call.1} parent=23 // pred_region
        %s131 = smul.u32 3, %s9
        %p132 = scmp.lt.s32.totalorder %s131, 11
        %s133 = scalar_select %p132, %s131, 11
        %s134 = smul.addr %s133, 8
        %s135 = scalar_lea.vmem %s0, %s134
        %s136 = smul.u32 3, %s9
      $region28: #{tpu_custom_call.1} parent=23 // pred_fallthru
        _
    $region24: #{tpu_custom_call.1} parent=5 // pred_fallthru
      _
    %p137 = scmp.le.s32.totalorder 1, %s9
    %p138 = scmp.lt.s32.totalorder %s9, 5
    %p139 = pnand %p137, %p138
    %p140 = pneg %p139
    // Predicated region
    $region29: #{tpu_custom_call.1} parent=5 // pred_check
      _
    $region30: #{tpu_custom_call.1} parent=5 // pred_check_branch
      %142 = sbr.rel (%p139) target = $region32
    $region31: #{tpu_custom_call.1} parent=5 // pred_region
      %s143 = ssub.s32 %s9, 1
      %s144 = smul.u32 3, %s14
      %p145 = scmp.lt.s32.totalorder %s144, 11
      %s146 = scalar_select %p145, %s144, 11
      %s147 = smul.addr %s146, 8
      %s148 = scalar_lea.vmem %s0, %s147
      %p149 = pneg %p35
      %p150 = pneg %p32
      %p151 = pneg %p56
      %p152 = pneg %p53
      %p153 = pneg %p77
      %p154 = pneg %p74
      %p155 = pneg %p103
      %p156 = pneg %p100
      %s157 = smul.u32 3, %s14
      %p158 = scmp.lt.s32.totalorder %s157, 11
      %s159 = scalar_select %p158, %s157, 11
      %s160 = smul.addr %s159, 8
      %s161 = scalar_lea.vmem %s3, %s160
      %s162 = smul.u32 3, %s14
      %p163 = scmp.lt.s32.totalorder %s162, 11
      %s164 = scalar_select %p163, %s162, 11
      %s165 = smul.addr %s164, 8
      %s166 = scalar_lea.vmem %s0, %s165
      %s167 = smul.u32 3, %s14
      %s168 = smul.u32 3, %s14
      %p169 = scmp.lt.s32.totalorder %s168, 11
      %s170 = scalar_select %p169, %s168, 11
      %s171 = smul.addr %s170, 8
      %s172 = scalar_lea.vmem %s3, %s171
      %s173 = smul.u32 3, %s14
      %v174 = vld [vmem:[%s166] sm:$0xff]
      %v175 = vld [vmem:[%s166 + $0x8] sm:$0xff]
      %v176 = vld [vmem:[%s166 + $0x10] sm:$0xff]
      %v177 = vld [vmem:[%s1] sm:$0xff]
      %v178 = vld [vmem:[%s1 + $0x8] sm:$0xff]
      %v179 = vld [vmem:[%s1 + $0x10] sm:$0xff]
      %v180 = vld [vmem:[%s1 + $0x18] sm:$0xff]
      %vm181 = vcmask 261120
      %v183 = vsel %vm181, %v174, 0
      %v186 = vsel %vm181, %v175, 0
      %v189 = vsel %vm181, %v176, 0
      %191 = vmatprep.subr.mxu0 0.0
      %192 = vmatpush1.msra.mxu0 0.0
      %193 = vmatprep.subr.mxu0 0.0
      %194 = vmatpush1.msra.mxu0 0.0
      %195 = vmatprep.subr.mxu0 0.0
      %196 = vmatpush1.msra.mxu0 0.0
      %197 = vmatprep.subr.mxu0 0.0
      %198 = vmatpush1.msra.mxu0 0.0
      %199 = vmatprep.subr.mxu0 0.0
      %200 = vmatpush1.msra.mxu0 0.0
      %201 = vmatprep.subr.mxu0 0.0
      %202 = vmatpush1.msra.mxu0 0.0
      %203 = vmatprep.subr.mxu0 0.0
      %204 = vmatpush1.msra.mxu0 0.0
      %205 = vmatprep.subr.mxu0 0.0
      %206 = vmatpush1.msra.mxu0 0.0
      %207 = vmatprep.subr.mxu0 0.0
      %208 = vmatpush1.msra.mxu0 0.0
      %209 = vmatprep.subr.mxu0 0.0
      %210 = vmatpush1.msra.mxu0 0.0
      %211 = vmatprep.subr.mxu0 0.0
      %212 = vmatpush1.msra.mxu0 0.0
      %213 = vmatprep.subr.mxu0 0.0
      %214 = vmatpush1.msra.mxu0 0.0
      %215 = vmatprep.subr.mxu0 0.0
      %216 = vmatpush1.msra.mxu0 %v180
      %217 = vmatprep.subr.mxu0 0.0
      %218 = vmatpush1.msra.mxu0 %v179
      %219 = vmatprep.subr.mxu0 0.0
      %220 = vmatpush1.msra.mxu0 %v178
      %221 = vmatprep.subr.mxu0 0.0
      %222 = vmatpush1.msra.mxu0 %v177
      %223 = vmatprep.subr.mxu0 0.0
      %224 = vmatpush2.msra.mxu0 0.0
      %225 = vmatprep.subr.mxu0 0.0
      %226 = vmatpush2.msra.mxu0 0.0
      %227 = vmatprep.subr.mxu0 0.0
      %228 = vmatpush2.msra.mxu0 0.0
      %229 = vmatprep.subr.mxu0 0.0
      %230 = vmatpush2.msra.mxu0 0.0
      %231 = vmatprep.subr.mxu0 0.0
      %232 = vmatpush2.msra.mxu0 0.0
      %233 = vmatprep.subr.mxu0 0.0
      %234 = vmatpush2.msra.mxu0 0.0
      %235 = vmatprep.subr.mxu0 0.0
      %236 = vmatpush2.msra.mxu0 0.0
      %237 = vmatprep.subr.mxu0 0.0
      %238 = vmatpush2.msra.mxu0 0.0
      %239 = vmatprep.subr.mxu0 0.0
      %240 = vmatpush2.msra.mxu0 0.0
      %241 = vmatprep.subr.mxu0 0.0
      %242 = vmatpush2.msra.mxu0 0.0
      %243 = vmatprep.subr.mxu0 0.0
      %244 = vmatpush2.msra.mxu0 0.0
      %245 = vmatprep.subr.mxu0 0.0
      %246 = vmatpush2.msra.mxu0 0.0
      %247 = vmatprep.subr.mxu0 0.0
      %248 = vmatpush2.msra.mxu0 0.0
      %249 = vmatprep.subr.mxu0 0.0
      %250 = vmatpush2.msra.mxu0 0.0
      %251 = vmatprep.subr.mxu0 0.0
      %252 = vmatpush2.msra.mxu0 0.0
      %253 = vmatprep.subr.mxu0 0.0
      %254 = vmatpush2.msra.mxu0 0.0
      %255 = vmatprep.mubr.f32.mxu0 0.0
      %256 = vmatmul.mubr.f32.gmra.mxu0 %v183
      %v257 = vpop.f32.mrf.mxu0
      %v258 = vadd.f32 0.0, %v257
      %v259 = vpop.f32.mrf.mxu0
      %260 = vmatprep.mubr.f32.mxu0 0.0
      %261 = vmatmul.mubr.f32.gmra.mxu0 %v186
      %v262 = vpop.f32.mrf.mxu0
      %v263 = vadd.f32 0.0, %v262
      %v264 = vpop.f32.mrf.mxu0
      %265 = vmatprep.mubr.f32.mxu0 0.0
      %266 = vmatmul.mubr.f32.gmra.mxu0 %v189
      %v267 = vpop.f32.mrf.mxu0
      %v268 = vadd.f32 0.0, %v267
      %v269 = vpop.f32.mrf.mxu0
      %270 = vdwg.mxu0
      %v271 = vlaneseq
      %v272 = vshrl.u32 %v271, 7
      %v273 = vadd.s32 %v272, 8
      %v274 = vadd.s32 %v272, 16
      %s275 = smul.u32 %s14, 24
      %v276 = vstv %s275
      %v277 = vadd.s32 %v276, %v272
      %v278 = vadd.s32 %v276, %v273
      %v279 = vadd.s32 %v276, %v274
      %vm280 = vcmp.lt.s32.totalorder %v272, 0
      %v281 = vsub.s32 0, %v272
      %v282 = vsel %vm280, %v281, %v272
      %v283 = vmul.u32.u64.compose %v282, 2863311531
      %v284 = vextract.low.u32 %v283
      %v285 = vextract.high.u32 %v283
      %v286 = vshrl.u32 %v285, 4
      %v287 = vmul.u32 %v286, 24
      %v288 = vsub.s32 %v282, %v287
      %v289 = vsub.s32 0, %v288
      %v290 = vsel %vm280, %v289, %v288
      %vm291 = vcmp.lt.s32.totalorder %v273, 0
      %v292 = vsub.s32 0, %v273
      %v293 = vsel %vm291, %v292, %v273
      %v294 = vmul.u32.u64.compose %v293, 2863311531
      %v295 = vextract.low.u32 %v294
      %v296 = vextract.high.u32 %v294
      %v297 = vshrl.u32 %v296, 4
      %v298 = vmul.u32 %v297, 24
      %v299 = vsub.s32 %v293, %v298
      %v300 = vsub.s32 0, %v299
      %v301 = vsel %vm291, %v300, %v299
      %vm302 = vcmp.lt.s32.totalorder %v274, 0
      %v303 = vsub.s32 0, %v274
      %v304 = vsel %vm302, %v303, %v274
      %v305 = vmul.u32.u64.compose %v304, 2863311531
      %v306 = vextract.low.u32 %v305
      %v307 = vextract.high.u32 %v305
      %v308 = vshrl.u32 %v307, 4
      %v309 = vmul.u32 %v308, 24
      %v310 = vsub.s32 %v304, %v309
      %v311 = vsub.s32 0, %v310
      %v312 = vsel %vm302, %v311, %v310
      %vm313 = vcmp.ne.s32.totalorder %v290, 0
      %vm314 = vcmp.ne.s32.totalorder %v301, 0
      %vm315 = vcmp.ne.s32.totalorder %v312, 0
      %vm316 = vcmp.lt.s32.totalorder %v290, 0
      %vm317 = vcmp.lt.s32.totalorder %v301, 0
      %vm318 = vcmp.lt.s32.totalorder %v312, 0
      %vm319 = vmand %vm316, %vm313
      %vm320 = vmand %vm317, %vm314
      %vm321 = vmand %vm318, %vm315
      %v322 = vadd.s32 %v290, 24
      %v323 = vadd.s32 %v301, 24
      %v324 = vadd.s32 %v312, 24
      %v325 = vsel %vm319, %v322, %v290
      %v326 = vsel %vm320, %v323, %v301
      %v327 = vsel %vm321, %v324, %v312
      %vm328 = vcmp.ge.s32.totalorder %v325, 8
      %vm329 = vcmp.ge.s32.totalorder %v326, 8
      %vm330 = vcmp.ge.s32.totalorder %v327, 8
      %vm331 = vcmp.lt.s32.totalorder %v277, 96
      %vm332 = vcmp.lt.s32.totalorder %v278, 96
      %vm333 = vcmp.lt.s32.totalorder %v279, 96
      %vm334 = vmand %vm328, %vm331
      %vm335 = vmand %vm329, %vm332
      %vm336 = vmand %vm330, %vm333
      %v337 = vsel %vm334, 1, 0
      %v338 = vsel %vm335, 1, 0
      %v339 = vsel %vm336, 1, 0
      %vm340 = vcmp.eq.s32.totalorder %v337, 1
      %vm341 = vcmp.eq.s32.totalorder %v338, 1
      %vm342 = vcmp.eq.s32.totalorder %v339, 1
      %v343 = vsel %vm340, %v258, 0.0
      %v344 = vsel %vm341, %v263, 0.0
      %v345 = vsel %vm342, %v268, 0.0
      %v346 = vrot.slane %v343, 7
      %v347 = vrot.slane %v344, 7
      %v348 = vrot.slane %v345, 7
      %vm349 = vcmp.lt.s32.totalorder %v272, 1
      %v350 = vsel %vm349, %v347, %v348
      %v351 = vsel %vm349, %v346, %v347
      %v352 = vsel %vm349, %v348, %v346
      %v353 = vadd.f32 %v352, 0.0
      %v354 = vadd.f32 %v351, 0.0
      %v355 = vadd.f32 %v350, 0.0
      %359 = vrot.lane.b32.xlu0 %v343, 126
      %v360 = vpop.permute.xlu0 %359
      %361 = vrot.lane.b32.xlu0 %v344, 126
      %v362 = vpop.permute.xlu0 %361
      %363 = vrot.lane.b32.xlu0 %v345, 126
      %v364 = vpop.permute.xlu0 %363
      %v368 = vadd.f32 %v353, %v360
      %v369 = vadd.f32 %v354, %v362
      %v370 = vadd.f32 %v355, %v364
      %371 = vrot.lane.b32.xlu0 %v343, 124
      %v372 = vpop.permute.xlu0 %371
      %373 = vrot.lane.b32.xlu0 %v344, 124
      %v374 = vpop.permute.xlu0 %373
      %375 = vrot.lane.b32.xlu0 %v345, 124
      %v376 = vpop.permute.xlu0 %375
      %v380 = vrot.slane %v372, 1
      %v381 = vrot.slane %v374, 1
      %v382 = vrot.slane %v376, 1
      %vm383 = vcmp.lt.s32.totalorder %v272, 7
      %v384 = vsel %vm383, %v381, %v382
      %v385 = vsel %vm383, %v380, %v381
      %v386 = vsel %vm383, %v382, %v380
      %v387 = vadd.f32 %v368, %v385
      %v388 = vadd.f32 %v369, %v384
      %v389 = vadd.f32 %v370, %v386
      %v390 = vld [vmem:[%s2] sm:$0x1]
      %v392 = vlaneseq
      %v393 = vshrl.u32 %v392, 7
      %v394 = vsub.s32 0, %v393
      %v395 = vrot.slane %v390, %v394
      %v397 = vadd.f32 %v387, %v395
      %v398 = vadd.f32 %v388, %v395
      %v399 = vadd.f32 %v389, %v395
      %vm400 = vcmask 15360
      %401 = vst.msk [vmem:[%s172] sm:$0xff] %vm400, %v397
      %402 = vst.msk [vmem:[%s172 + $0x8] sm:$0xff] %vm400, %v398
      %403 = vst.msk [vmem:[%s172 + $0x10] sm:$0xff] %vm400, %v399
      %s404 = smul.u32 3, %s14
      %p405 = scmp.lt.s32.totalorder %s404, 11
      %s406 = scalar_select %p405, %s404, 11
      %s407 = smul.addr %s406, 8
      %s408 = scalar_lea.vmem %s3, %s407
      // Predicated region
      $region33: #{tpu_custom_call.1} parent=31 // pred_check
        %p409 = pneg %p100
      $region34: #{tpu_custom_call.1} parent=31 // pred_check_branch
        %411 = sbr.rel (%p409) target = $region36
      $region35: #{tpu_custom_call.1} parent=31 // pred_region
        %s412 = smul.u32 3, %s14
      $region36: #{tpu_custom_call.1} parent=31 // pred_fallthru
        _
    $region32: #{tpu_custom_call.1} parent=5 // pred_fallthru
      _
    %p413 = scmp.le.s32.totalorder 2, %s9
    // Predicated region
    $region37: #{tpu_custom_call.1} parent=5 // pred_check
      %p414 = pneg %p413
    $region38: #{tpu_custom_call.1} parent=5 // pred_check_branch
      %416 = sbr.rel (%p414) target = $region40
    $region39: #{tpu_custom_call.1} parent=5 // pred_region
      %s417 = ssub.s32 %s9, 2
      // Predicated region
      $region41: #{tpu_custom_call.1} parent=39 // pred_check
        %p418 = pneg %p106
      $region42: #{tpu_custom_call.1} parent=39 // pred_check_branch
        %420 = sbr.rel (%p418) target = $region44
      $region43: #{tpu_custom_call.1} parent=39 // pred_region
        %s421 = smul.u32 3, %s15
        %p422 = scmp.lt.s32.totalorder %s421, 11
        %s423 = scalar_select %p422, %s421, 11
        %s424 = smul.addr %s423, 8
        %s425 = scalar_lea.vmem %s3, %s424
      $region44: #{tpu_custom_call.1} parent=39 // pred_fallthru
        _
    $region40: #{tpu_custom_call.1} parent=5 // pred_fallthru
      _
  $region6: #{tpu_custom_call.1} parent=0 // loop_footer
    %s13 = sadd.s32 1, %s9
  $region7: #{tpu_custom_call.1} parent=0 // loop_footer_branch
    %8 = sbr.rel target = $region3
  $region8: #{tpu_custom_call.1} parent=0 // loop_exit
    _

</llo_original>
